<compile_context>
chip_gen: v7x
topology: tpu7x:2x2x1
jax: 0.10.0
libtpu: 0.0.40
codegen_flags: <defaults>
</compile_context>

<pallas_src>
import functools

import jax
import jax.numpy as jnp
from jax.experimental import pallas as pl
from jax.experimental.pallas import tpu as pltpu

LANES = 128
SUBLANES = 8
EPS = 1e-08  # matches the PyTorch module (in fp32 the upper clip is 1.0, same as torch)


def _wbce_kernel(pred_ref, lbl_ref, acc_ref, *, m_rows, block_rows):
    """Accumulate sum(l*log(o)) and sum((1-l)*log(1-o)) into a (2,8,128) slab."""
    j = pl.program_id(0)

    @pl.when(j == 0)
    def _():
        acc_ref[...] = jnp.zeros_like(acc_ref)

    o = pred_ref[...].astype(jnp.float32)
    l = lbl_ref[...].astype(jnp.float32)
    o = jnp.clip(o, EPS, 1.0 - EPS)
    log_o = jnp.log(o)          # EUP
    log_1mo = jnp.log(1.0 - o)  # EUP
    t_pos = l * log_o
    t_neg = (1.0 - l) * log_1mo

    block_start = j * block_rows
    is_full = block_start + block_rows <= m_rows

    def _accum(tp, tn):
        # (block_rows,128) -> (block_rows//8, 8, 128) is (8,128)-tile aligned,
        # so the reshape is a view; the sum is pure VPU adds.
        acc_ref[0] += tp.reshape(-1, SUBLANES, LANES).sum(axis=0)
        acc_ref[1] += tn.reshape(-1, SUBLANES, LANES).sum(axis=0)

    # Fully valid block (all but possibly the last): no mask work at all.
    @pl.when(is_full)
    def _():
        _accum(t_pos, t_neg)

    # Trailing partial block: rows >= m_rows hold stale (un-DMA'd) VMEM data;
    # mask them with an in-kernel iota (no HBM mask stream, no host-side pad).
    # Any NaN/Inf produced on stale rows is filtered by the select.
    @pl.when(jnp.logical_not(is_full))
    def _():
        row = jax.lax.broadcasted_iota(jnp.int32, (block_rows, LANES), 0)
        valid = (block_start + row) < m_rows
        _accum(jnp.where(valid, t_pos, 0.0), jnp.where(valid, t_neg, 0.0))


def _bce_term_sums_jnp(o, l):
    o = jnp.clip(o.astype(jnp.float32), EPS, 1.0 - EPS)
    l = l.astype(jnp.float32)
    return jnp.sum(l * jnp.log(o)), jnp.sum((1.0 - l) * jnp.log(1.0 - o))


def weighted_bce_loss(output, label, weight=None, *, block_rows=8192):
    """Pallas TPU weighted BCE loss (mean over all elements). Returns scalar f32."""
    pos_weight = float(weight[0]) if weight is not None else 1.0
    neg_weight = float(weight[1]) if weight is not None else 1.0
    assert output.shape == label.shape

    n_elem = int(output.size)
    pred_flat = output.reshape(-1)  # contiguous reshape: free, keeps source dtype
    lbl_flat = label.reshape(-1)

    # Lane-dense layout: the kernel streams (m_rows, 128); the sub-128-element
    # flat remainder (rare) is handled with plain jnp below.
    m_rows = n_elem // LANES
    tail = n_elem - m_rows * LANES

    # block_rows must be a multiple of the packed sublane count of the source
    # dtypes (8 for 4-byte, 16 for bf16, 32 for int8).
    def _row_mult(dt):
        return SUBLANES * max(1, 4 // jnp.dtype(dt).itemsize)
    row_mult = max(_row_mult(output.dtype), _row_mult(label.dtype))

    if m_rows < row_mult:
        # Tiny input (< ~4K elements): not worth a kernel launch.
        sum_pos, sum_neg = _bce_term_sums_jnp(pred_flat, lbl_flat)
        return -(pos_weight * sum_pos + neg_weight * sum_neg) / jnp.float32(n_elem)

    max_full = (m_rows // row_mult) * row_mult
    block_rows = min(block_rows, max_full)
    block_rows = max(row_mult, (block_rows // row_mult) * row_mult)
    num_blocks = -(-m_rows // block_rows)

    if tail == 0:
        pred2d = pred_flat.reshape(m_rows, LANES)  # free
        lbl2d = lbl_flat.reshape(m_rows, LANES)
    else:
        # Rare (n_elem % 128 != 0): static prefix slice. The <128-element tail
        # itself is computed with jnp below.
        pred2d = pred_flat[: m_rows * LANES].reshape(m_rows, LANES)
        lbl2d = lbl_flat[: m_rows * LANES].reshape(m_rows, LANES)

    body_elems = m_rows * LANES
    bytes_in = body_elems * (jnp.dtype(output.dtype).itemsize
                             + jnp.dtype(label.dtype).itemsize)

    kernel = functools.partial(_wbce_kernel, m_rows=m_rows, block_rows=block_rows)

    partials = pl.pallas_call(
        kernel,
        out_shape=jax.ShapeDtypeStruct((2, SUBLANES, LANES), jnp.float32),
        grid_spec=pltpu.PrefetchScalarGridSpec(
            num_scalar_prefetch=0,
            grid=(num_blocks,),
            in_specs=[
                pl.BlockSpec((block_rows, LANES), lambda j: (j, 0)),
                pl.BlockSpec((block_rows, LANES), lambda j: (j, 0)),
            ],
            out_specs=pl.BlockSpec((2, SUBLANES, LANES), lambda j: (0, 0, 0)),
        ),
        compiler_params=pltpu.CompilerParams(
            # TODO(synk): on v7x shard the streaming reduction across both
            # TensorCores (pltpu.CORE_PARALLEL leading axis / pl.core_map).
            dimension_semantics=("arbitrary",),
            vmem_limit_bytes=32 * 1024 * 1024),
        cost_estimate=pl.CostEstimate(
            flops=10 * body_elems,
            transcendentals=2 * body_elems,
            bytes_accessed=bytes_in + 2 * SUBLANES * LANES * 4),
    )(pred2d, lbl2d)

    sum_pos = jnp.sum(partials[0])
    sum_neg = jnp.sum(partials[1])

    if tail:
        tp, tn = _bce_term_sums_jnp(pred_flat[m_rows * LANES:],
                                    lbl_flat[m_rows * LANES:])
        sum_pos = sum_pos + tp
        sum_neg = sum_neg + tn

    # Weights, negation and mean-divide applied once on scalars.
    return -(pos_weight * sum_pos + neg_weight * sum_neg) / jnp.float32(n_elem)


def _reference(output, label, weight):
    pos_w = weight[0] if weight is not None else 1.0
    neg_w = weight[1] if weight is not None else 1.0
    o = jnp.clip(output.astype(jnp.float32), EPS, 1.0 - EPS)
    l = label.astype(jnp.float32)
    loss = -(pos_w * l * jnp.log(o) + neg_w * (1.0 - l) * jnp.log(1.0 - o))
    return loss.mean()


if __name__ == "__main__":
    key = jax.random.PRNGKey(0)
    k1, k2, k3, k4 = jax.random.split(key, 4)

    # Test 1: NCHW segmentation-style output (128-divisible element count).
    shape = (2, 4, 16, 16)
    output = jax.nn.sigmoid(jax.random.normal(k1, shape, dtype=jnp.float32))
    label = (jax.random.uniform(k2, shape) > 0.5).astype(jnp.float32)
    weight = (2.0, 0.5)  # (pos_weight, neg_weight)

    loss = jax.block_until_ready(weighted_bce_loss(output, label, weight))
    ref = _reference(output, label, weight)
    assert jnp.allclose(loss, ref, rtol=1e-5, atol=1e-6), (loss, ref)

    # Test 2: awkward size (1155 elements) -> exercises the in-kernel partial
    # block mask and the sub-128 jnp tail path, with default weights.
    shape2 = (3, 5, 7, 11)
    output2 = jax.nn.sigmoid(jax.random.normal(k3, shape2, dtype=jnp.float32))
    label2 = (jax.random.uniform(k4, shape2) > 0.5).astype(jnp.float32)

    loss2 = jax.block_until_ready(weighted_bce_loss(output2, label2, None))
    ref2 = _reference(output2, label2, None)
    assert jnp.allclose(loss2, ref2, rtol=1e-5, atol=1e-6), (loss2, ref2)

    print("KERNEL_OK")
</pallas_src>

<mosaic_0001>
module attributes {stable_mosaic.version = 11 : i64} {
  func.func @_wbce_kernel(%arg0: i32, %arg1: memref<16x128xf32, #tpu.memory_space<vmem>>, %arg2: memref<16x128xf32, #tpu.memory_space<vmem>>, %arg3: memref<2x8x128xf32, #tpu.memory_space<vmem>>) attributes {dimension_semantics = [#tpu.dimension_semantics<arbitrary>], iteration_bounds = array<i64: 1>, scalar_prefetch = 0 : i64, scratch_operands = 0 : i64, tpu.core_type = #tpu.core_type<tc>, window_params = [{transform_indices = @transform_0, window_bounds = array<i64: 16, 128>}, {transform_indices = @transform_1, window_bounds = array<i64: 16, 128>}, {pipeline_mode = #tpu.pipeline_mode<synchronous>, transform_indices = @transform_2, window_bounds = array<i64: 2, 8, 128>}]} {
    %c0_i32 = arith.constant 0 : i32
    %0 = arith.cmpi eq, %arg0, %c0_i32 : i32
    %1 = arith.extui %0 : i1 to i32
    %c0_i32_0 = arith.constant 0 : i32
    %2 = arith.cmpi ne, %1, %c0_i32_0 : i32
    scf.if %2 {
      %cst_11 = arith.constant 0.000000e+00 : f32
      %25 = vector.broadcast %cst_11 : f32 to vector<2x8x128xf32>
      %c0_12 = arith.constant 0 : index
      %c0_13 = arith.constant 0 : index
      %c0_14 = arith.constant 0 : index
      %26 = vector.load %arg3[%c0_12, %c0_13, %c0_14] : memref<2x8x128xf32, #tpu.memory_space<vmem>>, vector<2x8x128xf32>
      tpu.vector_store %arg3[%c0_12, %c0_13, %c0_14], %25 {strides = array<i32>} : memref<2x8x128xf32, #tpu.memory_space<vmem>>, vector<2x8x128xf32>,
    } else {
    }
    %c0 = arith.constant 0 : index
    %c0_1 = arith.constant 0 : index
    %3 = vector.load %arg1[%c0, %c0_1] : memref<16x128xf32, #tpu.memory_space<vmem>>, vector<16x128xf32>
    %c0_2 = arith.constant 0 : index
    %c0_3 = arith.constant 0 : index
    %4 = vector.load %arg2[%c0_2, %c0_3] : memref<16x128xf32, #tpu.memory_space<vmem>>, vector<16x128xf32>
    %cst = arith.constant 9.99999993E-9 : f32
    %cst_4 = arith.constant 1.000000e+00 : f32
    %5 = vector.broadcast %cst : f32 to vector<16x128xf32>
    %6 = arith.maximumf %5, %3 : vector<16x128xf32>
    %7 = vector.broadcast %cst_4 : f32 to vector<16x128xf32>
    %8 = arith.minimumf %7, %6 : vector<16x128xf32>
    %9 = math.log %8 : vector<16x128xf32>
    %cst_5 = arith.constant 1.000000e+00 : f32
    %10 = vector.broadcast %cst_5 : f32 to vector<16x128xf32>
    %11 = arith.subf %10, %8 : vector<16x128xf32>
    %12 = math.log %11 : vector<16x128xf32>
    %13 = arith.mulf %4, %9 : vector<16x128xf32>
    %cst_6 = arith.constant 1.000000e+00 : f32
    %14 = vector.broadcast %cst_6 : f32 to vector<16x128xf32>
    %15 = arith.subf %14, %4 : vector<16x128xf32>
    %16 = arith.mulf %15, %12 : vector<16x128xf32>
    %c16_i32 = arith.constant 16 : i32
    %17 = arith.muli %arg0, %c16_i32 : i32
    %c16_i32_7 = arith.constant 16 : i32
    %18 = arith.addi %17, %c16_i32_7 : i32
    %c16_i32_8 = arith.constant 16 : i32
    %19 = arith.cmpi sle, %18, %c16_i32_8 : i32
    %20 = arith.extui %19 : i1 to i32
    %c0_i32_9 = arith.constant 0 : i32
    %21 = arith.cmpi ne, %20, %c0_i32_9 : i32
    scf.if %21 {
      %c0_11 = arith.constant 0 : index
      %c0_12 = arith.constant 0 : index
      %c0_13 = arith.constant 0 : index
      %25 = vector.load %arg3[%c0_11, %c0_12, %c0_13] : memref<2x8x128xf32, #tpu.memory_space<vmem>>, vector<1x8x128xf32>
      %26 = vector.shape_cast %25 : vector<1x8x128xf32> to vector<8x128xf32>
      %27 = vector.shape_cast %13 : vector<16x128xf32> to vector<2x8x128xf32>
      %cst_14 = arith.constant dense<0.000000e+00> : vector<8x128xf32>
      %28 = vector.multi_reduction <add>, %27, %cst_14 [0] : vector<2x8x128xf32> to vector<8x128xf32>
      %29 = arith.addf %26, %28 : vector<8x128xf32>
      %c0_15 = arith.constant 0 : index
      %c0_16 = arith.constant 0 : index
      %c0_17 = arith.constant 0 : index
      %30 = vector.load %arg3[%c0_15, %c0_16, %c0_17] : memref<2x8x128xf32, #tpu.memory_space<vmem>>, vector<1x8x128xf32>
      %31 = vector.shape_cast %30 : vector<1x8x128xf32> to vector<8x128xf32>
      %32 = vector.shape_cast %29 : vector<8x128xf32> to vector<1x8x128xf32>
      tpu.vector_store %arg3[%c0_15, %c0_16, %c0_17], %32 {strides = array<i32>} : memref<2x8x128xf32, #tpu.memory_space<vmem>>, vector<1x8x128xf32>,
      %c1 = arith.constant 1 : index
      %c0_18 = arith.constant 0 : index
      %c0_19 = arith.constant 0 : index
      %33 = vector.load %arg3[%c1, %c0_18, %c0_19] : memref<2x8x128xf32, #tpu.memory_space<vmem>>, vector<1x8x128xf32>
      %34 = vector.shape_cast %33 : vector<1x8x128xf32> to vector<8x128xf32>
      %35 = vector.shape_cast %16 : vector<16x128xf32> to vector<2x8x128xf32>
      %cst_20 = arith.constant dense<0.000000e+00> : vector<8x128xf32>
      %36 = vector.multi_reduction <add>, %35, %cst_20 [0] : vector<2x8x128xf32> to vector<8x128xf32>
      %37 = arith.addf %34, %36 : vector<8x128xf32>
      %c1_21 = arith.constant 1 : index
      %c0_22 = arith.constant 0 : index
      %c0_23 = arith.constant 0 : index
      %38 = vector.load %arg3[%c1_21, %c0_22, %c0_23] : memref<2x8x128xf32, #tpu.memory_space<vmem>>, vector<1x8x128xf32>
      %39 = vector.shape_cast %38 : vector<1x8x128xf32> to vector<8x128xf32>
      %40 = vector.shape_cast %37 : vector<8x128xf32> to vector<1x8x128xf32>
      tpu.vector_store %arg3[%c1_21, %c0_22, %c0_23], %40 {strides = array<i32>} : memref<2x8x128xf32, #tpu.memory_space<vmem>>, vector<1x8x128xf32>,
    } else {
    }
    %true = arith.constant true
    %22 = arith.xori %19, %true : i1
    %23 = arith.extui %22 : i1 to i32
    %c0_i32_10 = arith.constant 0 : i32
    %24 = arith.cmpi ne, %23, %c0_i32_10 : i32
    scf.if %24 {
      %25 = tpu.iota {dimensions = array<i32: 0>} : vector<16x128xi32>
      %26 = vector.broadcast %17 : i32 to vector<16x128xi32>
      %27 = arith.addi %26, %25 : vector<16x128xi32>
      %c16_i32_11 = arith.constant 16 : i32
      %28 = vector.broadcast %c16_i32_11 : i32 to vector<16x128xi32>
      %29 = arith.cmpi slt, %27, %28 : vector<16x128xi32>
      %cst_12 = arith.constant 0.000000e+00 : f32
      %30 = vector.broadcast %cst_12 : f32 to vector<16x128xf32>
      %31 = arith.select %29, %13, %30 : vector<16x128xi1>, vector<16x128xf32>
      %cst_13 = arith.constant 0.000000e+00 : f32
      %32 = vector.broadcast %cst_13 : f32 to vector<16x128xf32>
      %33 = arith.select %29, %16, %32 : vector<16x128xi1>, vector<16x128xf32>
      %c0_14 = arith.constant 0 : index
      %c0_15 = arith.constant 0 : index
      %c0_16 = arith.constant 0 : index
      %34 = vector.load %arg3[%c0_14, %c0_15, %c0_16] : memref<2x8x128xf32, #tpu.memory_space<vmem>>, vector<1x8x128xf32>
      %35 = vector.shape_cast %34 : vector<1x8x128xf32> to vector<8x128xf32>
      %36 = vector.shape_cast %31 : vector<16x128xf32> to vector<2x8x128xf32>
      %cst_17 = arith.constant dense<0.000000e+00> : vector<8x128xf32>
      %37 = vector.multi_reduction <add>, %36, %cst_17 [0] : vector<2x8x128xf32> to vector<8x128xf32>
      %38 = arith.addf %35, %37 : vector<8x128xf32>
      %c0_18 = arith.constant 0 : index
      %c0_19 = arith.constant 0 : index
      %c0_20 = arith.constant 0 : index
      %39 = vector.load %arg3[%c0_18, %c0_19, %c0_20] : memref<2x8x128xf32, #tpu.memory_space<vmem>>, vector<1x8x128xf32>
      %40 = vector.shape_cast %39 : vector<1x8x128xf32> to vector<8x128xf32>
      %41 = vector.shape_cast %38 : vector<8x128xf32> to vector<1x8x128xf32>
      tpu.vector_store %arg3[%c0_18, %c0_19, %c0_20], %41 {strides = array<i32>} : memref<2x8x128xf32, #tpu.memory_space<vmem>>, vector<1x8x128xf32>,
      %c1 = arith.constant 1 : index
      %c0_21 = arith.constant 0 : index
      %c0_22 = arith.constant 0 : index
      %42 = vector.load %arg3[%c1, %c0_21, %c0_22] : memref<2x8x128xf32, #tpu.memory_space<vmem>>, vector<1x8x128xf32>
      %43 = vector.shape_cast %42 : vector<1x8x128xf32> to vector<8x128xf32>
      %44 = vector.shape_cast %33 : vector<16x128xf32> to vector<2x8x128xf32>
      %cst_23 = arith.constant dense<0.000000e+00> : vector<8x128xf32>
      %45 = vector.multi_reduction <add>, %44, %cst_23 [0] : vector<2x8x128xf32> to vector<8x128xf32>
      %46 = arith.addf %43, %45 : vector<8x128xf32>
      %c1_24 = arith.constant 1 : index
      %c0_25 = arith.constant 0 : index
      %c0_26 = arith.constant 0 : index
      %47 = vector.load %arg3[%c1_24, %c0_25, %c0_26] : memref<2x8x128xf32, #tpu.memory_space<vmem>>, vector<1x8x128xf32>
      %48 = vector.shape_cast %47 : vector<1x8x128xf32> to vector<8x128xf32>
      %49 = vector.shape_cast %46 : vector<8x128xf32> to vector<1x8x128xf32>
      tpu.vector_store %arg3[%c1_24, %c0_25, %c0_26], %49 {strides = array<i32>} : memref<2x8x128xf32, #tpu.memory_space<vmem>>, vector<1x8x128xf32>,
    } else {
    }
    return
  }
  func.func @transform_0(%arg0: i32) -> (i32, i32) {
    %c0_i32 = arith.constant 0 : i32
    %c0_i32_0 = arith.constant 0 : i32
    return %arg0, %c0_i32 : i32, i32
  }
  func.func @transform_1(%arg0: i32) -> (i32, i32) {
    %c0_i32 = arith.constant 0 : i32
    %c0_i32_0 = arith.constant 0 : i32
    return %arg0, %c0_i32 : i32, i32
  }
  func.func @transform_2(%arg0: i32) -> (i32, i32, i32) {
    %c0_i32 = arith.constant 0 : i32
    %c0_i32_0 = arith.constant 0 : i32
    %c0_i32_1 = arith.constant 0 : i32
    %c0_i32_2 = arith.constant 0 : i32
    return %c0_i32, %c0_i32_0, %c0_i32_1 : i32, i32, i32
  }
}

</mosaic_0001>

<llo_original>
// kernel: tpu_custom_call.1
$region0: #{tpu_custom_call.1}
  #allocation0 [shape = 'u32[]', space=smem, size = 0x4, offset = 0x4, fixed_abs, tag = 'smem constant byte address 0x4 - core index']
  #allocation1 [shape = 'u32[144,128]{1,0:T(1,128)}', space=vmem, size = 0x12000, scoped, tag = 'internal scratch']
  %s0 = inlined_call_operand.hbm [shape: f32[16,128], index: 0, kind: input, shape index: {}]
  %s1 = inlined_call_operand.hbm [shape: f32[16,128], index: 1, kind: input, shape index: {}]
  %s2 = inlined_call_operand.hbm [shape: f32[2,8,128], index: 2, kind: output, shape index: {}]
  %s3 = sld [smem:[#allocation0]]
  $region38: #{tpu_custom_call.1} parent=0
    _
  %s5 = ssub.s32 1, %s3
  %s6 = scalar_select 0, %s5, %s3
  $region1: #{tpu_custom_call.1} parent=0
    #allocation2 [shape = 'u8[8192]{0}', space=vmem, size = 0x2000, scoped, tag = 'input window, operand 0, single buffered']
    #allocation3 [shape = 's32[1]{0}', space=sflag, size = 0x4, scoped, tag = 'scoped memory for tpu_custom_call.1']
    #allocation4 [shape = 's32[1]{0}', space=sflag, size = 0x4, scoped, tag = 'scoped memory for tpu_custom_call.1']
    #allocation5 [shape = 'u8[8192]{0}', space=vmem, size = 0x2000, scoped, tag = 'input window, operand 1, single buffered']
    #allocation6 [shape = 's32[1]{0}', space=sflag, size = 0x4, scoped, tag = 'scoped memory for tpu_custom_call.1']
    #allocation7 [shape = 'u8[8192]{0}', space=vmem, size = 0x2000, scoped, tag = 'output window, operand 0, single buffered']
    %7 = vsyncpa [#allocation3], 0
    %8 = vsyncpa [#allocation6], 0
    %9 = vsyncpa [#allocation4], 0
    // Predicated region
    $region2: #{tpu_custom_call.1} parent=1 // pred_check
      _
    $region3: #{tpu_custom_call.1} parent=1 // pred_check_branch
      %11 = sbr.rel (0) target = $region5
    $region4: #{tpu_custom_call.1} parent=1 // pred_region
      %s13 = ssub.s32 256, 256
      %14 = vsyncadd [#allocation3], %s13
      %s15 = sshll.u32 [#allocation2], 4
      %s16 = int_to_ptr.vmem [resolvable:$true] %s15
      %21 = dma.hbm_to_vmem [thread:$0]  %s0, 256, %s16, [#allocation3], 128, 128, 8
    $region5: #{tpu_custom_call.1} parent=1 // pred_fallthru
      _
    // Predicated region
    $region6: #{tpu_custom_call.1} parent=1 // pred_check
      _
    $region7: #{tpu_custom_call.1} parent=1 // pred_check_branch
      %23 = sbr.rel (0) target = $region9
    $region8: #{tpu_custom_call.1} parent=1 // pred_region
      %s25 = ssub.s32 256, 256
      %26 = vsyncadd [#allocation6], %s25
      %s27 = sshll.u32 [#allocation5], 4
      %s28 = int_to_ptr.vmem [resolvable:$true] %s27
      %33 = dma.hbm_to_vmem [thread:$0]  %s1, 256, %s28, [#allocation6], 128, 128, 8
    $region9: #{tpu_custom_call.1} parent=1 // pred_fallthru
      _
    // Predicated region
    $region10: #{tpu_custom_call.1} parent=1 // pred_check
      _
    $region11: #{tpu_custom_call.1} parent=1 // pred_check_branch
      %35 = sbr.rel (0) target = $region13
    $region12: #{tpu_custom_call.1} parent=1 // pred_region
      %36 = dma.done [#allocation3], 256
    $region13: #{tpu_custom_call.1} parent=1 // pred_fallthru
      _
    // Predicated region
    $region14: #{tpu_custom_call.1} parent=1 // pred_check
      _
    $region15: #{tpu_custom_call.1} parent=1 // pred_check_branch
      %38 = sbr.rel (0) target = $region17
    $region16: #{tpu_custom_call.1} parent=1 // pred_region
      %39 = dma.done [#allocation6], 256
    $region17: #{tpu_custom_call.1} parent=1 // pred_fallthru
      _
    %p40 = scmp.eq.s32.totalorder 0, 0
    // Predicated region
    $region18: #{tpu_custom_call.1} parent=1 // pred_check
      %p41 = pneg %p40
    $region19: #{tpu_custom_call.1} parent=1 // pred_check_branch
      %43 = sbr.rel (%p41) target = $region21
    $region20: #{tpu_custom_call.1} parent=1 // pred_region
      %44 = vst [vmem:[#allocation7] sm:$0xff] 0.0
      %45 = vst [vmem:[#allocation7 + $0x8] sm:$0xff] 0.0
    $region21: #{tpu_custom_call.1} parent=1 // pred_fallthru
      _
    %v46 = vld [vmem:[#allocation2] sm:$0xff]
    %v47 = vld [vmem:[#allocation2 + $0x8] sm:$0xff]
    %v48 = vld [vmem:[#allocation5] sm:$0xff]
    %v49 = vld [vmem:[#allocation5 + $0x8] sm:$0xff]
    %v50 = vmax.f32 %v46, 1e-08
    %v51 = vmax.f32 %v47, 1e-08
    %v52 = vmin.f32 %v50, 1.0
    %v53 = vmin.f32 %v51, 1.0
    %v54 = vlog2.pop %v52
    %v55 = vmul.f32 %v54, 0.6931472
    %v56 = vlog2.pop %v53
    %v57 = vmul.f32 %v56, 0.6931472
    %v58 = vsub.f32 1.0, %v52
    %v59 = vsub.f32 1.0, %v53
    %v60 = vlog2.pop %v58
    %v61 = vmul.f32 %v60, 0.6931472
    %v62 = vlog2.pop %v59
    %v63 = vmul.f32 %v62, 0.6931472
    %v64 = vmul.f32 %v48, %v55
    %v65 = vmul.f32 %v49, %v57
    %v66 = vsub.f32 1.0, %v48
    %v67 = vsub.f32 1.0, %v49
    %v68 = vmul.f32 %v66, %v61
    %v69 = vmul.f32 %v67, %v63
    %s70 = smul.u32 0, 16
    %s71 = sadd.s32 %s70, 16
    %p72 = scmp.le.s32.totalorder %s71, 16
    // Predicated region
    $region22: #{tpu_custom_call.1} parent=1 // pred_check
      %p73 = pneg %p72
    $region23: #{tpu_custom_call.1} parent=1 // pred_check_branch
      %75 = sbr.rel (%p73) target = $region25
    $region24: #{tpu_custom_call.1} parent=1 // pred_region
      %v76 = vld [vmem:[#allocation7] sm:$0xff]
      %v77 = vadd.f32 %v64, %v65
      %v78 = vadd.f32 %v76, %v77
      %79 = vst [vmem:[#allocation7] sm:$0xff] %v78
      %s80 = scalar_lea.vmem [#allocation7], 8
      %v81 = vld [vmem:[%s80] sm:$0xff]
      %v82 = vadd.f32 %v68, %v69
      %v83 = vadd.f32 %v81, %v82
      %84 = vst [vmem:[%s80] sm:$0xff] %v83
    $region25: #{tpu_custom_call.1} parent=1 // pred_fallthru
      _
    %p85 = scmp.gt.s32.totalorder %s71, 16
    // Predicated region
    $region26: #{tpu_custom_call.1} parent=1 // pred_check
      %p86 = pneg %p85
    $region27: #{tpu_custom_call.1} parent=1 // pred_check_branch
      %88 = sbr.rel (%p86) target = $region29
    $region28: #{tpu_custom_call.1} parent=1 // pred_region
      %v89 = vlaneseq
      %v90 = vshrl.u32 %v89, 7
      %v91 = vadd.s32 %v90, 8
      %v92 = vstv %s70
      %v93 = vadd.s32 %v92, %v90
      %v94 = vadd.s32 %v92, %v91
      %vm95 = vcmp.lt.s32.totalorder %v93, 16
      %vm96 = vcmp.lt.s32.totalorder %v94, 16
      %v97 = vsel %vm95, %v64, 0.0
      %v98 = vsel %vm96, %v65, 0.0
      %v99 = vsel %vm95, %v68, 0.0
      %v100 = vsel %vm96, %v69, 0.0
      %v101 = vld [vmem:[#allocation7] sm:$0xff]
      %v102 = vadd.f32 %v97, %v98
      %v103 = vadd.f32 %v101, %v102
      %104 = vst [vmem:[#allocation7] sm:$0xff] %v103
      %s105 = scalar_lea.vmem [#allocation7], 8
      %v106 = vld [vmem:[%s105] sm:$0xff]
      %v107 = vadd.f32 %v99, %v100
      %v108 = vadd.f32 %v106, %v107
      %109 = vst [vmem:[%s105] sm:$0xff] %v108
    $region29: #{tpu_custom_call.1} parent=1 // pred_fallthru
      _
    // Predicated region
    $region30: #{tpu_custom_call.1} parent=1 // pred_check
      _
    $region31: #{tpu_custom_call.1} parent=1 // pred_check_branch
      %111 = sbr.rel (0) target = $region33
    $region32: #{tpu_custom_call.1} parent=1 // pred_region
      %s113 = ssub.s32 256, 256
      %114 = vsyncadd [#allocation4], %s113
      %s115 = sshll.u32 [#allocation7], 4
      %s116 = int_to_ptr.vmem [resolvable:$true] %s115
      %121 = dma.vmem_to_hbm [thread:$0]  %s116, 256, %s2, [#allocation4], 128, 128, 8
    $region33: #{tpu_custom_call.1} parent=1 // pred_fallthru
      _
    // Predicated region
    $region34: #{tpu_custom_call.1} parent=1 // pred_check
      _
    $region35: #{tpu_custom_call.1} parent=1 // pred_check_branch
      %123 = sbr.rel (0) target = $region37
    $region36: #{tpu_custom_call.1} parent=1 // pred_region
      %124 = dma.done [#allocation4], 256
    $region37: #{tpu_custom_call.1} parent=1 // pred_fallthru
      _
    %125 = vsyncpa [#allocation3], 1
    %126 = vsyncpa [#allocation6], 1
    %127 = vsyncpa [#allocation4], 1

</llo_original>
